<compile_context>
chip_gen: v7x
topology: tpu7x:2x2x1
jax: 0.10.0
libtpu: 0.0.40
codegen_flags: <defaults>
</compile_context>

<pallas_src>
import functools

import jax
import jax.numpy as jnp
from jax.experimental import pallas as pl
from jax.experimental.pallas import tpu as pltpu


def _critic_kernel(s_ref, a_ref, w1s_ref, w1a_ref, b1_ref, w2_ref, b2_ref,
                   w3_ref, b3_ref, o_ref):
    # s_ref:   (TB, state_size)  bf16
    # a_ref:   (TB, action_size) bf16
    # w1s_ref: (state_size, 64)  bf16     b1_ref: (1, 64) f32
    # w1a_ref: (action_size, 64) bf16
    # w2_ref:  (64, 64)          bf16     b2_ref: (1, 64) f32
    # w3_ref:  (64, 1)           bf16     b3_ref: (1, 1)  f32
    # o_ref:   (TB, 1)           f32

    # Layer 1: split first matmul over (state, action) -> no concat needed.
    h1 = jnp.dot(s_ref[...], w1s_ref[...], preferred_element_type=jnp.float32)
    h1 = h1 + jnp.dot(a_ref[...], w1a_ref[...], preferred_element_type=jnp.float32)
    h1 = jnp.maximum(h1 + b1_ref[...], 0.0)                      # f32 bias + ReLU

    # Layer 2.
    h2 = jnp.dot(h1.astype(jnp.bfloat16), w2_ref[...],
                 preferred_element_type=jnp.float32)
    h2 = jnp.maximum(h2 + b2_ref[...], 0.0)                      # f32 bias + ReLU

    # Layer 3 (scalar head).
    out = jnp.dot(h2.astype(jnp.bfloat16), w3_ref[...],
                  preferred_element_type=jnp.float32) + b3_ref[...]
    # TODO(synk): (TB, 1) output uses masked lane stores; lane-dense (TB,) output
    # would need an XLU relayout and the byte count here is negligible, so skipped.
    o_ref[...] = out.astype(o_ref.dtype)


def _round_up(x, m):
    return (x + m - 1) // m * m


def critic_forward(state, action, params, *, max_tb=2048):
    """Pallas-fused forward of the Critic module.

    state:  (B, state_size)  f32
    action: (B, action_size) f32
    params: dict with w1_s, w1_a, b1, w2, b2, w3, b3 (weights stored as (in, out))
    returns (B, 1) f32
    """
    B, state_size = state.shape
    _, action_size = action.shape

    # --- batch tiling: TB rows per grid step (sublane-aligned, pad B if needed) ---
    Bp = _round_up(B, 8)
    TB = min(max_tb, Bp)
    Bp = _round_up(Bp, TB)

    s = state.astype(jnp.bfloat16)
    a = action.astype(jnp.bfloat16)
    if Bp != B:
        s = jnp.pad(s, ((0, Bp - B), (0, 0)))
        a = jnp.pad(a, ((0, Bp - B), (0, 0)))

    # Weights to bf16 for the MXU; biases stay f32.
    w1s = params["w1_s"].astype(jnp.bfloat16)
    w1a = params["w1_a"].astype(jnp.bfloat16)
    w2 = params["w2"].astype(jnp.bfloat16)
    w3 = params["w3"].astype(jnp.bfloat16)
    b1, b2, b3 = params["b1"], params["b2"], params["b3"]

    size_1 = w1s.shape[1]
    size_2 = w2.shape[1]
    d_in = state_size + action_size

    grid = (Bp // TB,)

    batch_spec = lambda feat: pl.BlockSpec((TB, feat), lambda i: (i, 0))
    const_spec = lambda shp: pl.BlockSpec(shp, lambda i: (0, 0))

    flops = 2 * Bp * (d_in * size_1 + size_1 * size_2 + size_2 * 1)
    bytes_accessed = (
        Bp * d_in * 2          # bf16 inputs
        + Bp * 1 * 4           # f32 output
        + (d_in * size_1 + size_1 * size_2 + size_2) * 2   # bf16 weights
        + (size_1 + size_2 + 1) * 4                        # f32 biases
    )

    out = pl.pallas_call(
        _critic_kernel,
        out_shape=jax.ShapeDtypeStruct((Bp, 1), jnp.float32),
        grid=grid,
        in_specs=[
            batch_spec(state_size),            # state tile
            batch_spec(action_size),           # action tile
            const_spec((state_size, size_1)),  # w1_s (resident)
            const_spec((action_size, size_1)), # w1_a (resident)
            const_spec((1, size_1)),           # b1
            const_spec((size_1, size_2)),      # w2
            const_spec((1, size_2)),           # b2
            const_spec((size_2, 1)),           # w3
            const_spec((1, 1)),                # b3
        ],
        out_specs=pl.BlockSpec((TB, 1), lambda i: (i, 0)),
        compiler_params=pltpu.CompilerParams(
            dimension_semantics=("parallel",),        # shard batch axis on v7x's 2 TCs
            vmem_limit_bytes=32 * 1024 * 1024,        # sized for v7x scoped VMEM
        ),
        cost_estimate=pl.CostEstimate(
            flops=flops, transcendentals=0, bytes_accessed=bytes_accessed),
    )(s, a, w1s, w1a, b1, w2, b2, w3, b3)

    return out[:B]


def init_critic_params(key, state_size, action_size, size_1=64, size_2=64):
    """Deterministic init mirroring nn.Linear's uniform(-1/sqrt(fan_in), +)."""
    d_in = state_size + action_size
    ks = jax.random.split(key, 6)

    def lin(kw, kb, fan_in, fan_out):
        bound = 1.0 / jnp.sqrt(jnp.float32(fan_in))
        w = jax.random.uniform(kw, (fan_in, fan_out), jnp.float32, -bound, bound)
        b = jax.random.uniform(kb, (1, fan_out), jnp.float32, -bound, bound)
        return w, b

    w1, b1 = lin(ks[0], ks[1], d_in, size_1)
    w2, b2 = lin(ks[2], ks[3], size_1, size_2)
    w3, b3 = lin(ks[4], ks[5], size_2, 1)
    return {
        "w1_s": w1[:state_size],   # split of the PyTorch (d_in, 64) weight
        "w1_a": w1[state_size:],
        "b1": b1, "w2": w2, "b2": b2, "w3": w3, "b3": b3,
    }


def critic_reference(state, action, params):
    """Plain-JAX reference mirroring the kernel's bf16-MXU / f32-accumulate path."""
    bf = lambda t: t.astype(jnp.bfloat16)
    h1 = (jnp.dot(bf(state), bf(params["w1_s"]), preferred_element_type=jnp.float32)
          + jnp.dot(bf(action), bf(params["w1_a"]), preferred_element_type=jnp.float32)
          + params["b1"])
    h1 = jnp.maximum(h1, 0.0)
    h2 = jnp.dot(bf(h1), bf(params["w2"]), preferred_element_type=jnp.float32) + params["b2"]
    h2 = jnp.maximum(h2, 0.0)
    return jnp.dot(bf(h2), bf(params["w3"]), preferred_element_type=jnp.float32) + params["b3"]


if __name__ == "__main__":
    state_size, action_size = 24, 8
    batch = 8

    key = jax.random.PRNGKey(0)
    k_state, k_action, k_params = jax.random.split(key, 3)

    state = jax.random.normal(k_state, (batch, state_size), jnp.float32)
    action = jax.random.normal(k_action, (batch, action_size), jnp.float32)
    params = init_critic_params(k_params, state_size, action_size)

    out = critic_forward(state, action, params)
    out = jax.block_until_ready(out)

    ref = critic_reference(state, action, params)
    assert out.shape == (batch, 1), out.shape
    # bf16 matmuls with f32 accumulation -> loosened tolerance vs the f32 spec.
    assert jnp.allclose(out, ref, atol=1e-2, rtol=1e-2), "mismatch vs reference"

    print("KERNEL_OK")
</pallas_src>

<mosaic_0001>
module attributes {stable_mosaic.version = 11 : i64} {
  func.func @_critic_kernel(%arg0: i32, %arg1: memref<8x24xbf16, #tpu.memory_space<vmem>>, %arg2: memref<8x8xbf16, #tpu.memory_space<vmem>>, %arg3: memref<24x64xbf16, #tpu.memory_space<vmem>>, %arg4: memref<8x64xbf16, #tpu.memory_space<vmem>>, %arg5: memref<1x64xf32, #tpu.memory_space<vmem>>, %arg6: memref<64x64xbf16, #tpu.memory_space<vmem>>, %arg7: memref<1x64xf32, #tpu.memory_space<vmem>>, %arg8: memref<64x1xbf16, #tpu.memory_space<vmem>>, %arg9: memref<1x1xf32, #tpu.memory_space<vmem>>, %arg10: memref<8x1xf32, #tpu.memory_space<vmem>>) attributes {dimension_semantics = [#tpu.dimension_semantics<parallel>], iteration_bounds = array<i64: 1>, scalar_prefetch = 0 : i64, scratch_operands = 0 : i64, tpu.core_type = #tpu.core_type<tc>, window_params = [{transform_indices = @transform_0, window_bounds = array<i64: 8, 24>}, {transform_indices = @transform_1, window_bounds = array<i64: 8, 8>}, {pipeline_mode = #tpu.pipeline_mode<synchronous>, transform_indices = @transform_2, window_bounds = array<i64: 24, 64>}, {pipeline_mode = #tpu.pipeline_mode<synchronous>, transform_indices = @transform_3, window_bounds = array<i64: 8, 64>}, {pipeline_mode = #tpu.pipeline_mode<synchronous>, transform_indices = @transform_4, window_bounds = array<i64: 1, 64>}, {pipeline_mode = #tpu.pipeline_mode<synchronous>, transform_indices = @transform_5, window_bounds = array<i64: 64, 64>}, {pipeline_mode = #tpu.pipeline_mode<synchronous>, transform_indices = @transform_6, window_bounds = array<i64: 1, 64>}, {pipeline_mode = #tpu.pipeline_mode<synchronous>, transform_indices = @transform_7, window_bounds = array<i64: 64, 1>}, {pipeline_mode = #tpu.pipeline_mode<synchronous>, transform_indices = @transform_8, window_bounds = array<i64: 1, 1>}, {transform_indices = @transform_9, window_bounds = array<i64: 8, 1>}]} {
    %c0 = arith.constant 0 : index
    %c0_0 = arith.constant 0 : index
    %0 = vector.load %arg1[%c0, %c0_0] : memref<8x24xbf16, #tpu.memory_space<vmem>>, vector<8x24xbf16>
    %c0_1 = arith.constant 0 : index
    %c0_2 = arith.constant 0 : index
    %1 = vector.load %arg3[%c0_1, %c0_2] : memref<24x64xbf16, #tpu.memory_space<vmem>>, vector<24x64xbf16>
    %cst = arith.constant dense<0.000000e+00> : vector<8x64xf32>
    %2 = tpu.matmul %0, %1, %cst {dimension_numbers = #tpu.dot_dimension_numbers<[1], [0], [0], [1], [0, 0, 1, 1], [], []>} : vector<8x24xbf16>, vector<24x64xbf16>, vector<8x64xf32> -> vector<8x64xf32>
    %c0_3 = arith.constant 0 : index
    %c0_4 = arith.constant 0 : index
    %3 = vector.load %arg2[%c0_3, %c0_4] : memref<8x8xbf16, #tpu.memory_space<vmem>>, vector<8x8xbf16>
    %c0_5 = arith.constant 0 : index
    %c0_6 = arith.constant 0 : index
    %4 = vector.load %arg4[%c0_5, %c0_6] : memref<8x64xbf16, #tpu.memory_space<vmem>>, vector<8x64xbf16>
    %cst_7 = arith.constant dense<0.000000e+00> : vector<8x64xf32>
    %5 = tpu.matmul %3, %4, %cst_7 {dimension_numbers = #tpu.dot_dimension_numbers<[1], [0], [0], [1], [0, 0, 1, 1], [], []>} : vector<8x8xbf16>, vector<8x64xbf16>, vector<8x64xf32> -> vector<8x64xf32>
    %6 = arith.addf %2, %5 : vector<8x64xf32>
    %c0_8 = arith.constant 0 : index
    %c0_9 = arith.constant 0 : index
    %7 = vector.load %arg5[%c0_8, %c0_9] : memref<1x64xf32, #tpu.memory_space<vmem>>, vector<1x64xf32>
    %8 = vector.broadcast %7 : vector<1x64xf32> to vector<8x64xf32>
    %9 = arith.addf %6, %8 : vector<8x64xf32>
    %cst_10 = arith.constant 0.000000e+00 : f32
    %10 = vector.broadcast %cst_10 : f32 to vector<8x64xf32>
    %11 = arith.maximumf %9, %10 : vector<8x64xf32>
    %12 = arith.truncf %11 : vector<8x64xf32> to vector<8x64xbf16>
    %c0_11 = arith.constant 0 : index
    %c0_12 = arith.constant 0 : index
    %13 = vector.load %arg6[%c0_11, %c0_12] : memref<64x64xbf16, #tpu.memory_space<vmem>>, vector<64x64xbf16>
    %cst_13 = arith.constant dense<0.000000e+00> : vector<8x64xf32>
    %14 = tpu.matmul %12, %13, %cst_13 {dimension_numbers = #tpu.dot_dimension_numbers<[1], [0], [0], [1], [0, 0, 1, 1], [], []>} : vector<8x64xbf16>, vector<64x64xbf16>, vector<8x64xf32> -> vector<8x64xf32>
    %c0_14 = arith.constant 0 : index
    %c0_15 = arith.constant 0 : index
    %15 = vector.load %arg7[%c0_14, %c0_15] : memref<1x64xf32, #tpu.memory_space<vmem>>, vector<1x64xf32>
    %16 = vector.broadcast %15 : vector<1x64xf32> to vector<8x64xf32>
    %17 = arith.addf %14, %16 : vector<8x64xf32>
    %cst_16 = arith.constant 0.000000e+00 : f32
    %18 = vector.broadcast %cst_16 : f32 to vector<8x64xf32>
    %19 = arith.maximumf %17, %18 : vector<8x64xf32>
    %20 = arith.truncf %19 : vector<8x64xf32> to vector<8x64xbf16>
    %c0_17 = arith.constant 0 : index
    %c0_18 = arith.constant 0 : index
    %21 = vector.load %arg8[%c0_17, %c0_18] : memref<64x1xbf16, #tpu.memory_space<vmem>>, vector<64x1xbf16>
    %cst_19 = arith.constant dense<0.000000e+00> : vector<8x1xf32>
    %22 = tpu.matmul %20, %21, %cst_19 {dimension_numbers = #tpu.dot_dimension_numbers<[1], [0], [0], [1], [0, 0, 1, 1], [], []>} : vector<8x64xbf16>, vector<64x1xbf16>, vector<8x1xf32> -> vector<8x1xf32>
    %c0_20 = arith.constant 0 : index
    %c0_21 = arith.constant 0 : index
    %23 = vector.load %arg9[%c0_20, %c0_21] : memref<1x1xf32, #tpu.memory_space<vmem>>, vector<1x1xf32>
    %24 = vector.broadcast %23 : vector<1x1xf32> to vector<8x1xf32>
    %25 = arith.addf %22, %24 : vector<8x1xf32>
    %c0_22 = arith.constant 0 : index
    %c0_23 = arith.constant 0 : index
    %26 = vector.load %arg10[%c0_22, %c0_23] : memref<8x1xf32, #tpu.memory_space<vmem>>, vector<8x1xf32>
    tpu.vector_store %arg10[%c0_22, %c0_23], %25 {strides = array<i32>} : memref<8x1xf32, #tpu.memory_space<vmem>>, vector<8x1xf32>,
    return
  }
  func.func @transform_0(%arg0: i32) -> (i32, i32) {
    %c0_i32 = arith.constant 0 : i32
    %c0_i32_0 = arith.constant 0 : i32
    return %arg0, %c0_i32 : i32, i32
  }
  func.func @transform_1(%arg0: i32) -> (i32, i32) {
    %c0_i32 = arith.constant 0 : i32
    %c0_i32_0 = arith.constant 0 : i32
    return %arg0, %c0_i32 : i32, i32
  }
  func.func @transform_2(%arg0: i32) -> (i32, i32) {
    %c0_i32 = arith.constant 0 : i32
    %c0_i32_0 = arith.constant 0 : i32
    %c0_i32_1 = arith.constant 0 : i32
    return %c0_i32, %c0_i32_0 : i32, i32
  }
  func.func @transform_3(%arg0: i32) -> (i32, i32) {
    %c0_i32 = arith.constant 0 : i32
    %c0_i32_0 = arith.constant 0 : i32
    %c0_i32_1 = arith.constant 0 : i32
    return %c0_i32, %c0_i32_0 : i32, i32
  }
  func.func @transform_4(%arg0: i32) -> (i32, i32) {
    %c0_i32 = arith.constant 0 : i32
    %c0_i32_0 = arith.constant 0 : i32
    %c0_i32_1 = arith.constant 0 : i32
    return %c0_i32, %c0_i32_0 : i32, i32
  }
  func.func @transform_5(%arg0: i32) -> (i32, i32) {
    %c0_i32 = arith.constant 0 : i32
    %c0_i32_0 = arith.constant 0 : i32
    %c0_i32_1 = arith.constant 0 : i32
    return %c0_i32, %c0_i32_0 : i32, i32
  }
  func.func @transform_6(%arg0: i32) -> (i32, i32) {
    %c0_i32 = arith.constant 0 : i32
    %c0_i32_0 = arith.constant 0 : i32
    %c0_i32_1 = arith.constant 0 : i32
    return %c0_i32, %c0_i32_0 : i32, i32
  }
  func.func @transform_7(%arg0: i32) -> (i32, i32) {
    %c0_i32 = arith.constant 0 : i32
    %c0_i32_0 = arith.constant 0 : i32
    %c0_i32_1 = arith.constant 0 : i32
    return %c0_i32, %c0_i32_0 : i32, i32
  }
  func.func @transform_8(%arg0: i32) -> (i32, i32) {
    %c0_i32 = arith.constant 0 : i32
    %c0_i32_0 = arith.constant 0 : i32
    %c0_i32_1 = arith.constant 0 : i32
    return %c0_i32, %c0_i32_0 : i32, i32
  }
  func.func @transform_9(%arg0: i32) -> (i32, i32) {
    %c0_i32 = arith.constant 0 : i32
    %c0_i32_0 = arith.constant 0 : i32
    return %arg0, %c0_i32 : i32, i32
  }
}

</mosaic_0001>

<llo_original>
// kernel: tpu_custom_call.1
$region0: #{tpu_custom_call.1}
  #allocation0 [shape = 'u32[]', space=smem, size = 0x4, offset = 0x4, fixed_abs, tag = 'smem constant byte address 0x4 - core index']
  #allocation1 [shape = 'u32[144,128]{1,0:T(1,128)}', space=vmem, size = 0x12000, scoped, tag = 'internal scratch']
  #allocation2 [shape = 'f32[1,1]{1,0:T(1,128)S(1)}', space=vmem, size = 0x200, scoped, tag = 'scoped memory for tpu_custom_call.1']
  %s0 = inlined_call_operand.vmem [shape: bf16[8,24], index: 0, kind: input, shape index: {}]
  %s1 = inlined_call_operand.vmem [shape: bf16[8,8], index: 1, kind: input, shape index: {}]
  %s2 = inlined_call_operand.vmem [shape: bf16[24,64], index: 2, kind: input, shape index: {}]
  %s3 = inlined_call_operand.hbm [shape: bf16[8,64], index: 3, kind: input, shape index: {}]
  %s4 = inlined_call_operand.vmem [shape: f32[1,64], index: 4, kind: input, shape index: {}]
  %s5 = inlined_call_operand.vmem [shape: bf16[64,64], index: 5, kind: input, shape index: {}]
  %s6 = inlined_call_operand.vmem [shape: f32[1,64], index: 6, kind: input, shape index: {}]
  %s7 = inlined_call_operand.vmem [shape: bf16[64,1], index: 7, kind: input, shape index: {}]
  %s8 = inlined_call_operand.<no memory space> [shape: f32[1,1], index: 8, kind: input, shape index: {}]
  %s9 = inlined_call_operand.vmem [shape: f32[8,1], index: 9, kind: output, shape index: {}]
  %s10 = sld [smem:[#allocation0]]
  $region50: #{tpu_custom_call.1} parent=0
    _
  %s12 = ssub.s32 1, %s10
  %s13 = scalar_select 0, %s12, %s10
  %v14 = vstv %s8
  %15 = vst [vmem:[#allocation2] sm:$0x1] %v14
  $region1: #{tpu_custom_call.1} parent=0
    #allocation3 [shape = 'u8[2048]{0}', space=vmem, size = 0x800, scoped, tag = 'input window, operand 3, single buffered']
    #allocation4 [shape = 's32[1]{0}', space=sflag, size = 0x4, scoped, tag = 'scoped memory for tpu_custom_call.1']
    %16 = vsyncpa [#allocation4], 0
    // Predicated region
    $region2: #{tpu_custom_call.1} parent=1 // pred_check
      _
    $region3: #{tpu_custom_call.1} parent=1 // pred_check_branch
      %18 = sbr.rel (0) target = $region5
    $region4: #{tpu_custom_call.1} parent=1 // pred_region
      _
    $region5: #{tpu_custom_call.1} parent=1 // pred_fallthru
      _
    // Predicated region
    $region6: #{tpu_custom_call.1} parent=1 // pred_check
      _
    $region7: #{tpu_custom_call.1} parent=1 // pred_check_branch
      %20 = sbr.rel (0) target = $region9
    $region8: #{tpu_custom_call.1} parent=1 // pred_region
      _
    $region9: #{tpu_custom_call.1} parent=1 // pred_fallthru
      _
    // Predicated region
    $region10: #{tpu_custom_call.1} parent=1 // pred_check
      _
    $region11: #{tpu_custom_call.1} parent=1 // pred_check_branch
      %22 = sbr.rel (0) target = $region13
    $region12: #{tpu_custom_call.1} parent=1 // pred_region
      _
    $region13: #{tpu_custom_call.1} parent=1 // pred_fallthru
      _
    // Predicated region
    $region14: #{tpu_custom_call.1} parent=1 // pred_check
      _
    $region15: #{tpu_custom_call.1} parent=1 // pred_check_branch
      %24 = sbr.rel (0) target = $region17
    $region16: #{tpu_custom_call.1} parent=1 // pred_region
      %s26 = ssub.s32 64, 64
      %27 = vsyncadd [#allocation4], %s26
      %s29 = sshll.u32 [#allocation3], 4
      %s30 = int_to_ptr.vmem [resolvable:$true] %s29
      %32 = dma.hbm_to_vmem [thread:$0]  %s3, 64, %s30, [#allocation4]
    $region17: #{tpu_custom_call.1} parent=1 // pred_fallthru
      _
    // Predicated region
    $region18: #{tpu_custom_call.1} parent=1 // pred_check
      _
    $region19: #{tpu_custom_call.1} parent=1 // pred_check_branch
      %34 = sbr.rel (0) target = $region21
    $region20: #{tpu_custom_call.1} parent=1 // pred_region
      _
    $region21: #{tpu_custom_call.1} parent=1 // pred_fallthru
      _
    // Predicated region
    $region22: #{tpu_custom_call.1} parent=1 // pred_check
      _
    $region23: #{tpu_custom_call.1} parent=1 // pred_check_branch
      %36 = sbr.rel (0) target = $region25
    $region24: #{tpu_custom_call.1} parent=1 // pred_region
      _
    $region25: #{tpu_custom_call.1} parent=1 // pred_fallthru
      _
    // Predicated region
    $region26: #{tpu_custom_call.1} parent=1 // pred_check
      _
    $region27: #{tpu_custom_call.1} parent=1 // pred_check_branch
      %38 = sbr.rel (0) target = $region29
    $region28: #{tpu_custom_call.1} parent=1 // pred_region
      _
    $region29: #{tpu_custom_call.1} parent=1 // pred_fallthru
      _
    // Predicated region
    $region30: #{tpu_custom_call.1} parent=1 // pred_check
      _
    $region31: #{tpu_custom_call.1} parent=1 // pred_check_branch
      %40 = sbr.rel (0) target = $region33
    $region32: #{tpu_custom_call.1} parent=1 // pred_region
      _
    $region33: #{tpu_custom_call.1} parent=1 // pred_fallthru
      _
    // Predicated region
    $region34: #{tpu_custom_call.1} parent=1 // pred_check
      _
    $region35: #{tpu_custom_call.1} parent=1 // pred_check_branch
      %42 = sbr.rel (0) target = $region37
    $region36: #{tpu_custom_call.1} parent=1 // pred_region
      _
    $region37: #{tpu_custom_call.1} parent=1 // pred_fallthru
      _
    // Predicated region
    $region38: #{tpu_custom_call.1} parent=1 // pred_check
      _
    $region39: #{tpu_custom_call.1} parent=1 // pred_check_branch
      %44 = sbr.rel (0) target = $region41
    $region40: #{tpu_custom_call.1} parent=1 // pred_region
      %45 = dma.done [#allocation4], 64
    $region41: #{tpu_custom_call.1} parent=1 // pred_fallthru
      _
    %v47 = vld [vmem:[%s0] sm:$0xf]
    %v48 = vld [vmem:[%s2] sm:$0xf]
    %v49 = vld [vmem:[%s2 + $0x4] sm:$0xf]
    %v50 = vld [vmem:[%s2 + $0x8] sm:$0xf]
    %v51 = vld [vmem:[%s1] sm:$0xf]
    %v52 = vld [vmem:[#allocation3] sm:$0xf]
    %vm53 = vcmask 64512
    %v55 = vsel %vm53, %v51, 0
    %vm57 = vcmask 1043456
    %v59 = vsel %vm57, %v52, 0
    %61 = vmatprep.subr.bf16.mxu0 0
    %62 = vmatpush1.bf16.msra.mxu0 %v59
    %63 = vmatprep.subr.bf16.mxu0 0
    %64 = vmatpush1.bf16.msra.mxu0 0
    %65 = vmatprep.subr.bf16.mxu0 0
    %66 = vmatpush1.bf16.msra.mxu0 0
    %67 = vmatprep.subr.bf16.mxu0 0
    %68 = vmatpush1.bf16.msra.mxu0 0
    %69 = vmatprep.subr.bf16.mxu0 0
    %70 = vmatpush1.bf16.msra.mxu0 0
    %71 = vmatprep.subr.bf16.mxu0 0
    %72 = vmatpush1.bf16.msra.mxu0 0
    %73 = vmatprep.subr.bf16.mxu0 0
    %74 = vmatpush1.bf16.msra.mxu0 0
    %75 = vmatprep.subr.bf16.mxu0 0
    %76 = vmatpush1.bf16.msra.mxu0 0
    %77 = vmatprep.subr.bf16.mxu0 0
    %78 = vmatpush1.bf16.msra.mxu0 0
    %79 = vmatprep.subr.bf16.mxu0 0
    %80 = vmatpush1.bf16.msra.mxu0 0
    %81 = vmatprep.subr.bf16.mxu0 0
    %82 = vmatpush1.bf16.msra.mxu0 0
    %83 = vmatprep.subr.bf16.mxu0 0
    %84 = vmatpush1.bf16.msra.mxu0 0
    %85 = vmatprep.subr.bf16.mxu0 0
    %86 = vmatpush1.bf16.msra.mxu0 0
    %87 = vmatprep.subr.bf16.mxu0 0
    %88 = vmatpush1.bf16.msra.mxu0 0
    %89 = vmatprep.subr.bf16.mxu0 0
    %90 = vmatpush1.bf16.msra.mxu0 0
    %91 = vmatprep.subr.bf16.mxu0 0
    %92 = vmatpush1.bf16.msra.mxu0 0
    %93 = vmatprep.mubr.bf16.mxu0 0
    %94 = vmatmul.mubr.bf16.gmra.mrb[0].mxu0 %v55
    %v95 = vpop.f32.mrb[0].mxu0
    %v96 = vadd.f32 0.0, %v95
    %v97 = vpop.f32.mrb[0].mxu0
    %v98 = vpop.f32.mrb[0].mxu0
    %v99 = vpop.f32.mrb[0].mxu0
    %100 = vdwg.mxu0
    %v104 = vunpack.c.l.b16 %v48
    %v105 = vunpack.c.l.b16 %v49
    %v106 = vunpack.c.l.b16 %v50
    %v107 = vpack.c.b16 %v105, %v104
    %v108 = vpack.c.b16 %v106, %v106
    %vm110 = vcmask 195584
    %v112 = vsel %vm110, %v47, 0
    %v115 = vsel %vm57, %v108, 0
    %117 = vmatprep.subr.bf16.mxu0 0
    %118 = vmatpush1.bf16.msra.mxu0 %v107
    %119 = vmatprep.subr.bf16.mxu0 0
    %120 = vmatpush1.bf16.msra.mxu0 %v115
    %121 = vmatprep.subr.bf16.mxu0 0
    %122 = vmatpush1.bf16.msra.mxu0 0
    %123 = vmatprep.subr.bf16.mxu0 0
    %124 = vmatpush1.bf16.msra.mxu0 0
    %125 = vmatprep.subr.bf16.mxu0 0
    %126 = vmatpush1.bf16.msra.mxu0 0
    %127 = vmatprep.subr.bf16.mxu0 0
    %128 = vmatpush1.bf16.msra.mxu0 0
    %129 = vmatprep.subr.bf16.mxu0 0
    %130 = vmatpush1.bf16.msra.mxu0 0
    %131 = vmatprep.subr.bf16.mxu0 0
    %132 = vmatpush1.bf16.msra.mxu0 0
    %133 = vmatprep.subr.bf16.mxu0 0
    %134 = vmatpush1.bf16.msra.mxu0 0
    %135 = vmatprep.subr.bf16.mxu0 0
    %136 = vmatpush1.bf16.msra.mxu0 0
    %137 = vmatprep.subr.bf16.mxu0 0
    %138 = vmatpush1.bf16.msra.mxu0 0
    %139 = vmatprep.subr.bf16.mxu0 0
    %140 = vmatpush1.bf16.msra.mxu0 0
    %141 = vmatprep.subr.bf16.mxu0 0
    %142 = vmatpush1.bf16.msra.mxu0 0
    %143 = vmatprep.subr.bf16.mxu0 0
    %144 = vmatpush1.bf16.msra.mxu0 0
    %145 = vmatprep.subr.bf16.mxu0 0
    %146 = vmatpush1.bf16.msra.mxu0 0
    %147 = vmatprep.subr.bf16.mxu0 0
    %148 = vmatpush1.bf16.msra.mxu0 0
    %149 = vmatprep.mubr.bf16.mxu0 0
    %150 = vmatmul.mubr.bf16.gmra.mrb[0].mxu0 %v112
    %v151 = vpop.f32.mrb[0].mxu0
    %v152 = vadd.f32 %v96, %v151
    %v153 = vpop.f32.mrb[0].mxu0
    %v154 = vpop.f32.mrb[0].mxu0
    %v155 = vpop.f32.mrb[0].mxu0
    %156 = vdwg.mxu0
    %v157 = vld [vmem:[%s4] sm:$0x1]
    %v159 = vlaneseq
    %v160 = vshrl.u32 %v159, 7
    %v161 = vsub.s32 0, %v160
    %v162 = vrot.slane %v157, %v161
    %v164 = vadd.f32 %v152, %v162
    %v165 = vmax.f32 %v164, 0.0
    %v166 = vpack.c.bf16 %v165, %v165
    %v167 = vld [vmem:[%s5] sm:$0xf]
    %v168 = vld [vmem:[%s5 + $0x4] sm:$0xf]
    %v169 = vld [vmem:[%s5 + $0x8] sm:$0xf]
    %v170 = vld [vmem:[%s5 + $0xc] sm:$0xf]
    %v171 = vld [vmem:[%s5 + $0x10] sm:$0xf]
    %v172 = vld [vmem:[%s5 + $0x14] sm:$0xf]
    %v173 = vld [vmem:[%s5 + $0x18] sm:$0xf]
    %v174 = vld [vmem:[%s5 + $0x1c] sm:$0xf]
    %v175 = vld [vmem:[%s6] sm:$0x1]
    %v177 = vlaneseq
    %v178 = vshrl.u32 %v177, 7
    %v179 = vsub.s32 0, %v178
    %v180 = vrot.slane %v175, %v179
    %v190 = vunpack.c.l.b16 %v167
    %v191 = vunpack.c.l.b16 %v168
    %v192 = vunpack.c.l.b16 %v169
    %v193 = vunpack.c.l.b16 %v170
    %v194 = vunpack.c.l.b16 %v171
    %v195 = vunpack.c.l.b16 %v172
    %v196 = vunpack.c.l.b16 %v173
    %v197 = vunpack.c.l.b16 %v174
    %v198 = vpack.c.b16 %v191, %v190
    %v199 = vpack.c.b16 %v193, %v192
    %v200 = vpack.c.b16 %v195, %v194
    %v201 = vpack.c.b16 %v197, %v196
    %vm206 = vcmask 523264
    %v208 = vsel %vm206, %v166, 0
    %210 = vmatprep.subr.bf16.mxu0 0
    %211 = vmatpush1.bf16.msra.mxu0 %v198
    %212 = vmatprep.subr.bf16.mxu0 0
    %213 = vmatpush1.bf16.msra.mxu0 %v199
    %214 = vmatprep.subr.bf16.mxu0 0
    %215 = vmatpush1.bf16.msra.mxu0 %v200
    %216 = vmatprep.subr.bf16.mxu0 0
    %217 = vmatpush1.bf16.msra.mxu0 %v201
    %218 = vmatprep.subr.bf16.mxu0 0
    %219 = vmatpush1.bf16.msra.mxu0 0
    %220 = vmatprep.subr.bf16.mxu0 0
    %221 = vmatpush1.bf16.msra.mxu0 0
    %222 = vmatprep.subr.bf16.mxu0 0
    %223 = vmatpush1.bf16.msra.mxu0 0
    %224 = vmatprep.subr.bf16.mxu0 0
    %225 = vmatpush1.bf16.msra.mxu0 0
    %226 = vmatprep.subr.bf16.mxu0 0
    %227 = vmatpush1.bf16.msra.mxu0 0
    %228 = vmatprep.subr.bf16.mxu0 0
    %229 = vmatpush1.bf16.msra.mxu0 0
    %230 = vmatprep.subr.bf16.mxu0 0
    %231 = vmatpush1.bf16.msra.mxu0 0
    %232 = vmatprep.subr.bf16.mxu0 0
    %233 = vmatpush1.bf16.msra.mxu0 0
    %234 = vmatprep.subr.bf16.mxu0 0
    %235 = vmatpush1.bf16.msra.mxu0 0
    %236 = vmatprep.subr.bf16.mxu0 0
    %237 = vmatpush1.bf16.msra.mxu0 0
    %238 = vmatprep.subr.bf16.mxu0 0
    %239 = vmatpush1.bf16.msra.mxu0 0
    %240 = vmatprep.subr.bf16.mxu0 0
    %241 = vmatpush1.bf16.msra.mxu0 0
    %242 = vmatprep.mubr.bf16.mxu0 0
    %243 = vmatmul.mubr.bf16.gmra.mrb[0].mxu0 %v208
    %v244 = vpop.f32.mrb[0].mxu0
    %v245 = vadd.f32 %v180, %v244
    %v246 = vpop.f32.mrb[0].mxu0
    %v247 = vpop.f32.mrb[0].mxu0
    %v248 = vpop.f32.mrb[0].mxu0
    %249 = vdwg.mxu0
    %v250 = vmax.f32 %v245, 0.0
    %v251 = vpack.c.bf16 %v250, %v250
    %v252 = vld [vmem:[%s7] sm:$0xf]
    %v253 = vld [vmem:[%s7 + $0x4] sm:$0xf]
    %v254 = vld [vmem:[%s7 + $0x8] sm:$0xf]
    %v255 = vld [vmem:[%s7 + $0xc] sm:$0xf]
    %v256 = vld [vmem:[%s7 + $0x10] sm:$0xf]
    %v257 = vld [vmem:[%s7 + $0x14] sm:$0xf]
    %v258 = vld [vmem:[%s7 + $0x18] sm:$0xf]
    %v259 = vld [vmem:[%s7 + $0x1c] sm:$0xf]
    %v260 = vld [vmem:[#allocation2] sm:$0x1]
    %v262 = vlaneseq
    %v263 = vshrl.u32 %v262, 7
    %v264 = vsub.s32 0, %v263
    %v265 = vrot.slane %v260, %v264
    %v275 = vunpack.c.l.b16 %v252
    %v276 = vunpack.c.l.b16 %v253
    %v277 = vunpack.c.l.b16 %v254
    %v278 = vunpack.c.l.b16 %v255
    %v279 = vunpack.c.l.b16 %v256
    %v280 = vunpack.c.l.b16 %v257
    %v281 = vunpack.c.l.b16 %v258
    %v282 = vunpack.c.l.b16 %v259
    %v283 = vpack.c.b16 %v276, %v275
    %v284 = vpack.c.b16 %v278, %v277
    %v285 = vpack.c.b16 %v280, %v279
    %v286 = vpack.c.b16 %v282, %v281
    %v292 = vsel %vm206, %v251, 0
    %294 = vmatprep.subr.bf16.mxu0 0
    %295 = vmatpush1.bf16.msra.mxu0 %v283
    %296 = vmatprep.subr.bf16.mxu0 0
    %297 = vmatpush1.bf16.msra.mxu0 %v284
    %298 = vmatprep.subr.bf16.mxu0 0
    %299 = vmatpush1.bf16.msra.mxu0 %v285
    %300 = vmatprep.subr.bf16.mxu0 0
    %301 = vmatpush1.bf16.msra.mxu0 %v286
    %302 = vmatprep.subr.bf16.mxu0 0
    %303 = vmatpush1.bf16.msra.mxu0 0
    %304 = vmatprep.subr.bf16.mxu0 0
    %305 = vmatpush1.bf16.msra.mxu0 0
    %306 = vmatprep.subr.bf16.mxu0 0
    %307 = vmatpush1.bf16.msra.mxu0 0
    %308 = vmatprep.subr.bf16.mxu0 0
    %309 = vmatpush1.bf16.msra.mxu0 0
    %310 = vmatprep.subr.bf16.mxu0 0
    %311 = vmatpush1.bf16.msra.mxu0 0
    %312 = vmatprep.subr.bf16.mxu0 0
    %313 = vmatpush1.bf16.msra.mxu0 0
    %314 = vmatprep.subr.bf16.mxu0 0
    %315 = vmatpush1.bf16.msra.mxu0 0
    %316 = vmatprep.subr.bf16.mxu0 0
    %317 = vmatpush1.bf16.msra.mxu0 0
    %318 = vmatprep.subr.bf16.mxu0 0
    %319 = vmatpush1.bf16.msra.mxu0 0
    %320 = vmatprep.subr.bf16.mxu0 0
    %321 = vmatpush1.bf16.msra.mxu0 0
    %322 = vmatprep.subr.bf16.mxu0 0
    %323 = vmatpush1.bf16.msra.mxu0 0
    %324 = vmatprep.subr.bf16.mxu0 0
    %325 = vmatpush1.bf16.msra.mxu0 0
    %326 = vmatprep.mubr.bf16.mxu0 0
    %327 = vmatmul.mubr.bf16.gmra.mrb[0].mxu0 %v292
    %v328 = vpop.f32.mrb[0].mxu0
    %v329 = vadd.f32 %v265, %v328
    %v330 = vpop.f32.mrb[0].mxu0
    %v331 = vpop.f32.mrb[0].mxu0
    %v332 = vpop.f32.mrb[0].mxu0
    %333 = vdwg.mxu0
    %vm334 = vcmask 7168
    %335 = vst.msk [vmem:[%s9] sm:$0xff] %vm334, %v329
    // Predicated region
    $region42: #{tpu_custom_call.1} parent=1 // pred_check
      _
    $region43: #{tpu_custom_call.1} parent=1 // pred_check_branch
      %337 = sbr.rel (0) target = $region45
    $region44: #{tpu_custom_call.1} parent=1 // pred_region
      _
    $region45: #{tpu_custom_call.1} parent=1 // pred_fallthru
      _
    // Predicated region
    $region46: #{tpu_custom_call.1} parent=1 // pred_check
      _
    $region47: #{tpu_custom_call.1} parent=1 // pred_check_branch
      %339 = sbr.rel (0) target = $region49
    $region48: #{tpu_custom_call.1} parent=1 // pred_region
      _
    $region49: #{tpu_custom_call.1} parent=1 // pred_fallthru
      _
    %340 = vsyncpa [#allocation4], 1

</llo_original>
